<compile_context>
chip_gen: v7x
topology: tpu7x:2x2x1
jax: 0.10.0
libtpu: 0.0.40
codegen_flags: <defaults>
</compile_context>

<pallas_src>
import jax
import jax.numpy as jnp
from jax.experimental import pallas as pl
from jax.experimental.pallas import tpu as pltpu

_TILE_B = 1024  # (TB, 10) f32 pads to (TB, 128) lanes in VMEM => 512 KiB/buffer;
                # x2 double-buffering + output block stays far under even v5e's
                # 16 MiB scoped-VMEM default, so no vmem_limit_bytes is needed.


def _linear_sigmoid_kernel(x_ref, w_ref, b_ref, o_ref):
    # x_ref: (TB, K) f32 VMEM; w_ref: (1, K) f32 VMEM; b_ref: (1,) f32 SMEM.
    x = x_ref[...]                      # (TB, K)
    w = w_ref[...]                      # (1, K), broadcast across rows
    b = b_ref[0]                        # scalar bias from SMEM
    # VPU multiply + XLU lane reduction -- no MXU involvement.
    z = jnp.sum(x * w, axis=-1, keepdims=True) + b          # (TB, 1)
    # sigmoid(z) = 1 / (1 + exp(-z)); exp and approx-reciprocal both ride the EUP slot.
    e = jnp.exp(-z)
    o_ref[...] = pl.reciprocal(1.0 + e, approx=True).astype(o_ref.dtype)


def simple_nn_forward(x, weight, bias):
    """Equivalent of torch.sigmoid(nn.Linear(10, 1)(x)).

    x:      (B, 10) float32
    weight: (1, 10) float32  (PyTorch convention: (out_features, in_features))
    bias:   (1,)    float32
    returns (B, 1)  float32
    """
    B, K = x.shape
    N, K_w = weight.shape
    assert K == K_w and N == 1
    b1 = bias.reshape((N,))

    if B <= _TILE_B:
        # Tiny batch: single grid-free invocation; whole arrays resident in VMEM,
        # bias in SMEM. No per-grid-step pipeline overhead, no index_map machinery.
        return pl.pallas_call(
            _linear_sigmoid_kernel,
            out_shape=jax.ShapeDtypeStruct((B, N), jnp.float32),
            in_specs=[
                pl.BlockSpec(memory_space=pltpu.MemorySpace.VMEM),   # x
                pl.BlockSpec(memory_space=pltpu.MemorySpace.VMEM),   # weight row
                pl.BlockSpec(memory_space=pltpu.MemorySpace.SMEM),   # bias scalar
            ],
            out_specs=pl.BlockSpec(memory_space=pltpu.MemorySpace.VMEM),
        )(x, weight, b1)

    # Large batch: tile the batch dim so the x DMA double-buffers against the
    # VPU work; weight/bias use constant index maps and stay resident.
    return pl.pallas_call(
        _linear_sigmoid_kernel,
        out_shape=jax.ShapeDtypeStruct((B, N), jnp.float32),
        grid=(pl.cdiv(B, _TILE_B),),
        in_specs=[
            pl.BlockSpec((_TILE_B, K), lambda i: (i, 0)),            # x tile
            pl.BlockSpec((N, K), lambda i: (0, 0)),                  # weight (resident)
            pl.BlockSpec(memory_space=pltpu.MemorySpace.SMEM),       # bias scalar
        ],
        out_specs=pl.BlockSpec((_TILE_B, N), lambda i: (i, 0)),
        compiler_params=pltpu.CompilerParams(
            # Batch tiles are independent -> shard them across TensorCores.
            dimension_semantics=("parallel",),
        ),
    )(x, weight, b1)


if __name__ == "__main__":
    key = jax.random.PRNGKey(0)
    kx, kw, kb, kx2 = jax.random.split(key, 4)

    B, IN_F, OUT_F = 8, 10, 1
    x = jax.random.normal(kx, (B, IN_F), dtype=jnp.float32)
    # Deterministic parameter init (mimics nn.Linear's uniform(-1/sqrt(in), 1/sqrt(in))).
    bound = 1.0 / jnp.sqrt(jnp.float32(IN_F))
    weight = jax.random.uniform(kw, (OUT_F, IN_F), dtype=jnp.float32,
                                minval=-bound, maxval=bound)
    bias = jax.random.uniform(kb, (OUT_F,), dtype=jnp.float32,
                              minval=-bound, maxval=bound)

    # Small-batch (grid-free) path.
    out = simple_nn_forward(x, weight, bias)
    jax.block_until_ready(out)
    ref = jax.nn.sigmoid(x @ weight.T + bias)
    assert out.shape == (B, OUT_F)
    # approx-reciprocal sigmoid trades ~1e-3-level error for an EUP-only nonlinearity.
    assert jnp.allclose(out, ref, atol=5e-3, rtol=0.0)

    # Large-batch (tiled, parallel-grid) path.
    B2 = 4096
    x2 = jax.random.normal(kx2, (B2, IN_F), dtype=jnp.float32)
    out2 = simple_nn_forward(x2, weight, bias)
    jax.block_until_ready(out2)
    ref2 = jax.nn.sigmoid(x2 @ weight.T + bias)
    assert out2.shape == (B2, OUT_F)
    assert jnp.allclose(out2, ref2, atol=5e-3, rtol=0.0)

    print("KERNEL_OK")
</pallas_src>

<mosaic_0001>
module attributes {stable_mosaic.version = 11 : i64} {
  func.func @_linear_sigmoid_kernel(%arg0: memref<8x10xf32, #tpu.memory_space<vmem>>, %arg1: memref<1x10xf32, #tpu.memory_space<vmem>>, %arg2: memref<1xf32, #tpu.memory_space<smem>>, %arg3: memref<8x1xf32, #tpu.memory_space<vmem>>) attributes {dimension_semantics = [], scalar_prefetch = 0 : i64, scratch_operands = 0 : i64, tpu.core_type = #tpu.core_type<tc>} {
    %c0 = arith.constant 0 : index
    %c0_0 = arith.constant 0 : index
    %0 = vector.load %arg0[%c0, %c0_0] : memref<8x10xf32, #tpu.memory_space<vmem>>, vector<8x10xf32>
    %c0_1 = arith.constant 0 : index
    %c0_2 = arith.constant 0 : index
    %1 = vector.load %arg1[%c0_1, %c0_2] : memref<1x10xf32, #tpu.memory_space<vmem>>, vector<1x10xf32>
    %c0_3 = arith.constant 0 : index
    %2 = memref.load %arg2[%c0_3] : memref<1xf32, #tpu.memory_space<smem>>
    %3 = vector.broadcast %1 : vector<1x10xf32> to vector<8x10xf32>
    %4 = arith.mulf %0, %3 : vector<8x10xf32>
    %cst = arith.constant dense<0.000000e+00> : vector<8xf32>
    %5 = vector.multi_reduction <add>, %4, %cst [1] : vector<8x10xf32> to vector<8xf32>
    %6 = vector.shape_cast %5 : vector<8xf32> to vector<8x1xf32>
    %7 = vector.broadcast %2 : f32 to vector<8x1xf32>
    %8 = arith.addf %6, %7 : vector<8x1xf32>
    %cst_4 = arith.constant 0.000000e+00 : f32
    %9 = vector.broadcast %cst_4 : f32 to vector<8x1xf32>
    %10 = arith.subf %9, %8 : vector<8x1xf32>
    %11 = math.exp %10 : vector<8x1xf32>
    %cst_5 = arith.constant 1.000000e+00 : f32
    %12 = vector.broadcast %cst_5 : f32 to vector<8x1xf32>
    %13 = arith.addf %12, %11 : vector<8x1xf32>
    %14 = tpu.reciprocal %13 {approx = true} : vector<8x1xf32> -> vector<8x1xf32>
    %c0_6 = arith.constant 0 : index
    %c0_7 = arith.constant 0 : index
    %15 = vector.load %arg3[%c0_6, %c0_7] : memref<8x1xf32, #tpu.memory_space<vmem>>, vector<8x1xf32>
    tpu.vector_store %arg3[%c0_6, %c0_7], %14 {strides = array<i32>} : memref<8x1xf32, #tpu.memory_space<vmem>>, vector<8x1xf32>,
    return
  }
}

</mosaic_0001>

<llo_original>
// kernel: tpu_custom_call.1
$region0: #{tpu_custom_call.1}
  #allocation0 [shape = 'u32[]', space=smem, size = 0x4, offset = 0x4, fixed_abs, tag = 'smem constant byte address 0x4 - core index']
  #allocation1 [shape = 'u32[144,128]{1,0:T(1,128)}', space=vmem, size = 0x12000, scoped, tag = 'internal scratch']
  #allocation2 [shape = 'f32[1]{0:T(128)S(6)}', space=smem, size = 0x200, scoped, tag = 'scoped memory for tpu_custom_call.1']
  %s0 = inlined_call_operand.hbm [shape: f32[8,10], index: 0, kind: input, shape index: {}]
  %s1 = inlined_call_operand.vmem [shape: f32[1,10], index: 1, kind: input, shape index: {}]
  %s2 = inlined_call_operand.<no memory space> [shape: f32[1], index: 2, kind: input, shape index: {}]
  %s3 = inlined_call_operand.vmem [shape: f32[8,1], index: 3, kind: output, shape index: {}]
  %s4 = sld [smem:[#allocation0]]
  $region26: #{tpu_custom_call.1} parent=0
    _
  %s6 = ssub.s32 1, %s4
  %s7 = scalar_select 0, %s6, %s4
  %8 = sst [smem:[#allocation2]] %s2
  $region1: #{tpu_custom_call.1} parent=0
    #allocation3 [shape = 'u8[4096]{0}', space=vmem, size = 0x1000, scoped, tag = 'input window, operand 0, single buffered']
    #allocation4 [shape = 's32[1]{0}', space=sflag, size = 0x4, scoped, tag = 'scoped memory for tpu_custom_call.1']
    %9 = vsyncpa [#allocation4], 0
    // Predicated region
    $region2: #{tpu_custom_call.1} parent=1 // pred_check
      _
    $region3: #{tpu_custom_call.1} parent=1 // pred_check_branch
      %11 = sbr.rel (0) target = $region5
    $region4: #{tpu_custom_call.1} parent=1 // pred_region
      %s13 = ssub.s32 128, 128
      %14 = vsyncadd [#allocation4], %s13
      %s16 = sshll.u32 [#allocation3], 4
      %s17 = int_to_ptr.vmem [resolvable:$true] %s16
      %19 = dma.hbm_to_vmem [thread:$0]  %s0, 128, %s17, [#allocation4]
    $region5: #{tpu_custom_call.1} parent=1 // pred_fallthru
      _
    // Predicated region
    $region6: #{tpu_custom_call.1} parent=1 // pred_check
      _
    $region7: #{tpu_custom_call.1} parent=1 // pred_check_branch
      %21 = sbr.rel (0) target = $region9
    $region8: #{tpu_custom_call.1} parent=1 // pred_region
      _
    $region9: #{tpu_custom_call.1} parent=1 // pred_fallthru
      _
    // Predicated region
    $region10: #{tpu_custom_call.1} parent=1 // pred_check
      _
    $region11: #{tpu_custom_call.1} parent=1 // pred_check_branch
      %23 = sbr.rel (0) target = $region13
    $region12: #{tpu_custom_call.1} parent=1 // pred_region
      _
    $region13: #{tpu_custom_call.1} parent=1 // pred_fallthru
      _
    // Predicated region
    $region14: #{tpu_custom_call.1} parent=1 // pred_check
      _
    $region15: #{tpu_custom_call.1} parent=1 // pred_check_branch
      %25 = sbr.rel (0) target = $region17
    $region16: #{tpu_custom_call.1} parent=1 // pred_region
      %26 = dma.done [#allocation4], 128
    $region17: #{tpu_custom_call.1} parent=1 // pred_fallthru
      _
    %v27 = vld [vmem:[#allocation3] sm:$0xff]
    %v28 = vld [vmem:[%s1] sm:$0x1]
    %s29 = sld [smem:[#allocation2]]
    %v31 = vlaneseq
    %v32 = vshrl.u32 %v31, 7
    %v33 = vsub.s32 0, %v32
    %v34 = vrot.slane %v28, %v33
    %v36 = vmul.f32 %v27, %v34
    %vm37 = vcmask 80896
    %v38 = vsel %vm37, %v36, 0.0
    %39 = vadd.xlane.f32.xlu0 %v38
    %v40 = vpop.xlane.xlu0 %39
    %v41 = vstv %s29
    %v42 = vadd.f32 %v40, %v41
    %v43 = vsub.f32 0.0, %v42
    %v44 = vmul.f32 %v43, 1.442695
    %v45 = vpow.pop %v44
    %v46 = vadd.f32 %v45, 1.0
    %v47 = vrcp.pop %v46
    %vm48 = vcmask 7168
    %49 = vst.msk [vmem:[%s3] sm:$0xff] %vm48, %v47
    // Predicated region
    $region18: #{tpu_custom_call.1} parent=1 // pred_check
      _
    $region19: #{tpu_custom_call.1} parent=1 // pred_check_branch
      %51 = sbr.rel (0) target = $region21
    $region20: #{tpu_custom_call.1} parent=1 // pred_region
      _
    $region21: #{tpu_custom_call.1} parent=1 // pred_fallthru
      _
    // Predicated region
    $region22: #{tpu_custom_call.1} parent=1 // pred_check
      _
    $region23: #{tpu_custom_call.1} parent=1 // pred_check_branch
      %53 = sbr.rel (0) target = $region25
    $region24: #{tpu_custom_call.1} parent=1 // pred_region
      _
    $region25: #{tpu_custom_call.1} parent=1 // pred_fallthru
      _
    %54 = vsyncpa [#allocation4], 1

</llo_original>
